<compile_context>
chip_gen: v7x
topology: tpu7x:2x2x1
jax: 0.10.0
libtpu: 0.0.40
codegen_flags: <defaults>
</compile_context>

<pallas_src>
import math

import jax
import jax.numpy as jnp
from jax.experimental import pallas as pl
from jax.experimental.pallas import tpu as pltpu


def _copy_kernel(x_ref, o_ref):
    # Identity copy of one lane-dense tile (the view op is data-preserving).
    o_ref[...] = x_ref[...]


def _resolve_shape(total, shape):
    """Resolve a single -1 in the target shape, like torch.Tensor.view."""
    shape = list(shape)
    if -1 in shape:
        idx = shape.index(-1)
        known = 1
        for i, s in enumerate(shape):
            if i != idx:
                known *= s
        assert known > 0 and total % known == 0, "view shape incompatible with input size"
        shape[idx] = total // known
    assert math.prod(shape) == total, "view shape incompatible with input size"
    return tuple(shape)


# ~4 MiB per block: good on v6e (1.4 TB/s -> step time >> 0.35us overhead) and
# v7x (3.2 TB/s -> overhead tax ~6-12%).  Residency = in+out, double buffered
# = ~16 MiB, so we raise the scoped VMEM limit explicitly (v5e defaults to
# 16 MiB scoped) while staying well under v7x's 64 MiB physical VMEM.
_BLOCK_BYTES = 4 * 1024 * 1024
_VMEM_LIMIT = 48 * 1024 * 1024


def _sublane_multiple(dtype):
    # Packed-tile minimum rows: (8,128) f32, (16,128) bf16, (32,128) int8/fp8.
    return {4: 8, 2: 16, 1: 32}.get(jnp.dtype(dtype).itemsize, 8)


def _round_up(x, m):
    return ((x + m - 1) // m) * m


def _single_block_copy(x2):
    """One full-array block (block == array dims, so no (8,128) constraint)."""
    nbytes = x2.size * jnp.dtype(x2.dtype).itemsize
    return pl.pallas_call(
        _copy_kernel,
        out_shape=jax.ShapeDtypeStruct(x2.shape, x2.dtype),
        grid=(1,),
        in_specs=[pl.BlockSpec(x2.shape, lambda i: (0, 0))],
        out_specs=pl.BlockSpec(x2.shape, lambda i: (0, 0)),
        cost_estimate=pl.CostEstimate(flops=0, transcendentals=0,
                                      bytes_accessed=2 * nbytes),
    )(x2)


def _identity_copy_pallas(flat):
    """Stream a flat 1-D array through a tiled, lane-dense Pallas copy."""
    total = flat.shape[0]
    itemsize = jnp.dtype(flat.dtype).itemsize
    sub_min = _sublane_multiple(flat.dtype)

    # Widest lane width (multiple of 128) that divides the element count
    # EXACTLY — no jnp.pad and no tail slice, so the only HBM traffic is the
    # copy itself — while still giving at least one packed sublane tile.
    lane = None
    for cand in (4096, 2048, 1024, 512, 256, 128):
        if total % cand == 0 and total // cand >= sub_min:
            lane = cand
            break

    if lane is None:
        # Tiny or lane-ragged input: single full-array block, still unpadded.
        # TODO(synk): a huge total not divisible by 128 would not fit one VMEM
        # block; such shapes do not occur for this module's view targets.
        return _single_block_copy(flat.reshape(1, total)).reshape(-1)

    rows = total // lane
    x2 = flat.reshape(rows, lane)

    # Row-block: dtype-aware sublane multiple, capped only by the byte budget.
    budget_rows = max(sub_min,
                      (_BLOCK_BYTES // (lane * itemsize)) // sub_min * sub_min)
    block_rows = min(budget_rows, _round_up(rows, sub_min))

    # Keep at least 2 grid steps on medium inputs so megacore chips (v7x)
    # shard the copy across both TensorCores instead of idling one.
    if rows > 2 * sub_min and block_rows >= rows:
        block_rows = min(block_rows, _round_up(pl.cdiv(rows, 2), sub_min))

    grid = (pl.cdiv(rows, block_rows),)   # edge block (if any) is masked by Pallas
    nbytes = total * itemsize

    out2 = pl.pallas_call(
        _copy_kernel,
        out_shape=jax.ShapeDtypeStruct(x2.shape, x2.dtype),
        grid=grid,
        in_specs=[pl.BlockSpec((block_rows, lane), lambda i: (i, 0))],
        out_specs=pl.BlockSpec((block_rows, lane), lambda i: (i, 0)),
        compiler_params=pltpu.CompilerParams(
            dimension_semantics=("parallel",),
            vmem_limit_bytes=_VMEM_LIMIT),
        cost_estimate=pl.CostEstimate(flops=0, transcendentals=0,
                                      bytes_accessed=2 * nbytes),
    )(x2)
    return out2.reshape(-1)


class View:
    """JAX/Pallas equivalent of the PyTorch View nn.Module."""

    def __init__(self, *shape):
        self.shape = shape

    def __call__(self, x):
        total = math.prod(x.shape)
        target = _resolve_shape(total, self.shape)
        # NOTE: the zero-cost path is `return x.reshape(target)` (metadata
        # only).  The Pallas copy below exists so the op has a real kernel to
        # benchmark; it streams exactly 1 HBM read + 1 HBM write with no
        # padding passes, hidden alias copies, or tail slices.
        flat = x.reshape(-1)
        out_flat = _identity_copy_pallas(flat)
        return out_flat.reshape(target)


if __name__ == "__main__":
    key = jax.random.PRNGKey(0)
    # Small NCHW-style input: batch=2, channels=4, spatial=16x16.
    x = jax.random.normal(key, (2, 4, 16, 16), dtype=jnp.float32)

    # Typical usage in the original codebase: flatten feature maps per batch.
    view = View(2, -1)  # -> (2, 4*16*16) = (2, 1024)
    y = view(x)
    y = jax.block_until_ready(y)

    # Correctness check against a plain JAX reshape (== torch .view semantics
    # for a contiguous tensor).
    ref = x.reshape(2, -1)
    assert y.shape == (2, 1024)
    assert y.dtype == x.dtype
    assert bool(jnp.array_equal(y, ref))

    print("KERNEL_OK")
</pallas_src>

<mosaic_0001>
module attributes {stable_mosaic.version = 11 : i64} {
  func.func @_copy_kernel(%arg0: i32, %arg1: memref<8x256xf32, #tpu.memory_space<vmem>>, %arg2: memref<8x256xf32, #tpu.memory_space<vmem>>) attributes {dimension_semantics = [#tpu.dimension_semantics<parallel>], iteration_bounds = array<i64: 1>, scalar_prefetch = 0 : i64, scratch_operands = 0 : i64, tpu.core_type = #tpu.core_type<tc>, window_params = [{transform_indices = @transform_0, window_bounds = array<i64: 8, 256>}, {transform_indices = @transform_1, window_bounds = array<i64: 8, 256>}]} {
    %c0 = arith.constant 0 : index
    %c0_0 = arith.constant 0 : index
    %0 = vector.load %arg1[%c0, %c0_0] : memref<8x256xf32, #tpu.memory_space<vmem>>, vector<8x256xf32>
    %c0_1 = arith.constant 0 : index
    %c0_2 = arith.constant 0 : index
    %1 = vector.load %arg2[%c0_1, %c0_2] : memref<8x256xf32, #tpu.memory_space<vmem>>, vector<8x256xf32>
    tpu.vector_store %arg2[%c0_1, %c0_2], %0 {strides = array<i32>} : memref<8x256xf32, #tpu.memory_space<vmem>>, vector<8x256xf32>,
    return
  }
  func.func @transform_0(%arg0: i32) -> (i32, i32) {
    %c0_i32 = arith.constant 0 : i32
    %c0_i32_0 = arith.constant 0 : i32
    return %arg0, %c0_i32 : i32, i32
  }
  func.func @transform_1(%arg0: i32) -> (i32, i32) {
    %c0_i32 = arith.constant 0 : i32
    %c0_i32_0 = arith.constant 0 : i32
    return %arg0, %c0_i32 : i32, i32
  }
}

</mosaic_0001>

<llo_original>
// kernel: tpu_custom_call.1
$region0: #{tpu_custom_call.1}
  #allocation0 [shape = 'u32[]', space=smem, size = 0x4, offset = 0x4, fixed_abs, tag = 'smem constant byte address 0x4 - core index']
  #allocation1 [shape = 'u32[144,128]{1,0:T(1,128)}', space=vmem, size = 0x12000, scoped, tag = 'internal scratch']
  %s0 = inlined_call_operand.hbm [shape: f32[8,256], index: 0, kind: input, shape index: {}]
  %s1 = inlined_call_operand.hbm [shape: f32[8,256], index: 1, kind: output, shape index: {}]
  %s2 = sld [smem:[#allocation0]]
  $region18: #{tpu_custom_call.1} parent=0
    _
  %s4 = ssub.s32 1, %s2
  %s5 = scalar_select 0, %s4, %s2
  $region1: #{tpu_custom_call.1} parent=0
    #allocation2 [shape = 'u8[8192]{0}', space=vmem, size = 0x2000, scoped, tag = 'input window, operand 0, single buffered']
    #allocation3 [shape = 's32[1]{0}', space=sflag, size = 0x4, scoped, tag = 'scoped memory for tpu_custom_call.1']
    #allocation4 [shape = 's32[1]{0}', space=sflag, size = 0x4, scoped, tag = 'scoped memory for tpu_custom_call.1']
    #allocation5 [shape = 'u8[8192]{0}', space=vmem, size = 0x2000, scoped, tag = 'output window, operand 0, single buffered']
    %6 = vsyncpa [#allocation3], 0
    %7 = vsyncpa [#allocation4], 0
    // Predicated region
    $region2: #{tpu_custom_call.1} parent=1 // pred_check
      _
    $region3: #{tpu_custom_call.1} parent=1 // pred_check_branch
      %9 = sbr.rel (0) target = $region5
    $region4: #{tpu_custom_call.1} parent=1 // pred_region
      %s11 = ssub.s32 256, 256
      %12 = vsyncadd [#allocation3], %s11
      %s14 = sshll.u32 [#allocation2], 4
      %s15 = int_to_ptr.vmem [resolvable:$true] %s14
      %17 = dma.hbm_to_vmem [thread:$0]  %s0, 256, %s15, [#allocation3]
    $region5: #{tpu_custom_call.1} parent=1 // pred_fallthru
      _
    // Predicated region
    $region6: #{tpu_custom_call.1} parent=1 // pred_check
      _
    $region7: #{tpu_custom_call.1} parent=1 // pred_check_branch
      %19 = sbr.rel (0) target = $region9
    $region8: #{tpu_custom_call.1} parent=1 // pred_region
      %20 = dma.done [#allocation3], 256
    $region9: #{tpu_custom_call.1} parent=1 // pred_fallthru
      _
    %v21 = vld [vmem:[#allocation2] sm:$0xff]
    %v22 = vld [vmem:[#allocation2 + $0x8] sm:$0xff]
    %23 = vst [vmem:[#allocation5] sm:$0xff] %v21
    %24 = vst [vmem:[#allocation5 + $0x8] sm:$0xff] %v22
    // Predicated region
    $region10: #{tpu_custom_call.1} parent=1 // pred_check
      _
    $region11: #{tpu_custom_call.1} parent=1 // pred_check_branch
      %26 = sbr.rel (0) target = $region13
    $region12: #{tpu_custom_call.1} parent=1 // pred_region
      %s28 = ssub.s32 256, 256
      %29 = vsyncadd [#allocation4], %s28
      %s31 = sshll.u32 [#allocation5], 4
      %s32 = int_to_ptr.vmem [resolvable:$true] %s31
      %34 = dma.vmem_to_hbm [thread:$0]  %s32, 256, %s1, [#allocation4]
    $region13: #{tpu_custom_call.1} parent=1 // pred_fallthru
      _
    // Predicated region
    $region14: #{tpu_custom_call.1} parent=1 // pred_check
      _
    $region15: #{tpu_custom_call.1} parent=1 // pred_check_branch
      %36 = sbr.rel (0) target = $region17
    $region16: #{tpu_custom_call.1} parent=1 // pred_region
      %37 = dma.done [#allocation4], 256
    $region17: #{tpu_custom_call.1} parent=1 // pred_fallthru
      _
    %38 = vsyncpa [#allocation3], 1
    %39 = vsyncpa [#allocation4], 1

</llo_original>
